<compile_context>
chip_gen: v5e
topology: v5e:2x2
jax: 0.10.0
libtpu: 0.0.40
codegen_flags: <defaults>
</compile_context>

<pallas_src>
import functools

import jax
import jax.numpy as jnp
from jax.experimental import pallas as pl
from jax.experimental.pallas import tpu as pltpu


_D_IN, _H1, _H2, _D_OUT = 784, 128, 256, 10


def _round_up(x, m):
    return -(-x // m) * m


_N3P = _round_up(_D_OUT, 128)   # 128 (lane-dense padded output width)


# ----------------------------------------------------------------------------
# Fused MLP kernel: relu(x@W1+b1) -> relu(.@W2+b2) -> .@W3+b3 -> softmax
# ----------------------------------------------------------------------------
def _mlp_fused_kernel(x_ref, w1_ref, b1_ref, w2_ref, b2_ref, w3_ref, b3_ref,
                      o_ref, *, n_valid_out):
    # Layer 1: cast the streamed f32 x tile to bf16 right before the MXU.
    x_bf16 = x_ref[...].astype(jnp.bfloat16)                  # (TB, 784)
    h1 = jnp.dot(x_bf16, w1_ref[...], preferred_element_type=jnp.float32)
    h1 = jnp.maximum(h1 + b1_ref[...], 0.0)                    # (TB, 128) f32

    # Layer 2: (TB, 128) @ (128, 256)
    h2 = jnp.dot(h1.astype(w2_ref.dtype), w2_ref[...],
                 preferred_element_type=jnp.float32)
    h2 = jnp.maximum(h2 + b2_ref[...], 0.0)                    # (TB, 256) f32

    # Layer 3: (TB, 256) @ (256, 128-padded)
    logits = jnp.dot(h2.astype(w3_ref.dtype), w3_ref[...],
                     preferred_element_type=jnp.float32)
    logits = logits + b3_ref[...]                               # (TB, 128) f32

    # Softmax over the first n_valid_out lanes; padded lanes are masked so they
    # contribute exp(.) = 0 to the denominator.
    lane = jax.lax.broadcasted_iota(jnp.int32, logits.shape, 1)
    logits = jnp.where(lane < n_valid_out, logits, -1e30)
    m = jnp.max(logits, axis=-1, keepdims=True)
    e = jnp.exp(logits - m)
    denom = jnp.sum(e, axis=-1, keepdims=True)
    probs = e * pl.reciprocal(denom, approx=True)               # EUP, not VALU
    o_ref[...] = probs.astype(o_ref.dtype)                      # bf16 writeback


# ----------------------------------------------------------------------------
# One-time parameter preparation (hoisted out of the forward pass)
# ----------------------------------------------------------------------------
def prepare_params(params):
    """Torch-layout params (weight=(out,in), bias=(out,)) -> kernel layout."""
    return {
        "w1": params["w1"].T.astype(jnp.bfloat16),                       # (784, 128)
        "b1": params["b1"].reshape(1, _H1).astype(jnp.float32),          # (1, 128)
        "w2": params["w2"].T.astype(jnp.bfloat16),                       # (128, 256)
        "b2": params["b2"].reshape(1, _H2).astype(jnp.float32),          # (1, 256)
        "w3": jnp.pad(params["w3"].T,
                      ((0, 0), (0, _N3P - _D_OUT))).astype(jnp.bfloat16),  # (256, 128)
        "b3": jnp.pad(params["b3"].reshape(1, _D_OUT),
                      ((0, 0), (0, _N3P - _D_OUT))).astype(jnp.float32),   # (1, 128)
    }


# ----------------------------------------------------------------------------
# Forward wrapper: batch tiling + pallas_call plumbing
# ----------------------------------------------------------------------------
def mnist_forward(x, prepped, *, tile_b=1024):
    """x: (B, 784) float32, prepped = prepare_params(...) -> (B, 10) float32."""
    bsz = x.shape[0]

    # 16-row alignment (bf16 sublane packing). For moderate batches pick
    # ~half the batch so the grid has >= 2 steps (both v7x TCs get work);
    # cap at tile_b so VMEM stays comfortable on every generation.
    tb = min(tile_b, max(16, _round_up(pl.cdiv(bsz, 2), 16)))
    bp = _round_up(bsz, tb)
    grid = bp // tb

    xp = x if bp == bsz else jnp.pad(x, ((0, bp - bsz), (0, 0)))

    flops = 2 * bp * (_D_IN * _H1 + _H1 * _H2 + _H2 * _N3P)
    bytes_accessed = (bp * _D_IN * 4 + bp * _N3P * 2
                      + 2 * (_D_IN * _H1 + _H1 * _H2 + _H2 * _N3P)
                      + 4 * (_H1 + _H2 + _N3P))
    cost = pl.CostEstimate(flops=flops, transcendentals=bp * _N3P,
                           bytes_accessed=bytes_accessed)

    out = pl.pallas_call(
        functools.partial(_mlp_fused_kernel, n_valid_out=_D_OUT),
        out_shape=jax.ShapeDtypeStruct((bp, _N3P), jnp.bfloat16),
        grid=(grid,),
        in_specs=[
            pl.BlockSpec((tb, _D_IN), lambda i: (i, 0)),     # x tile, streamed f32
            pl.BlockSpec((_D_IN, _H1), lambda i: (0, 0)),    # W1 (replicated)
            pl.BlockSpec((1, _H1), lambda i: (0, 0)),        # b1
            pl.BlockSpec((_H1, _H2), lambda i: (0, 0)),      # W2
            pl.BlockSpec((1, _H2), lambda i: (0, 0)),        # b2
            pl.BlockSpec((_H2, _N3P), lambda i: (0, 0)),     # W3
            pl.BlockSpec((1, _N3P), lambda i: (0, 0)),       # b3
        ],
        out_specs=pl.BlockSpec((tb, _N3P), lambda i: (i, 0)),
        compiler_params=pltpu.CompilerParams(
            dimension_semantics=("parallel",),               # megacore on v7x
            vmem_limit_bytes=32 * 1024 * 1024),              # headroom on v5e
        cost_estimate=cost,
    )(xp, prepped["w1"], prepped["b1"], prepped["w2"], prepped["b2"],
      prepped["w3"], prepped["b3"])

    return out[:bsz, :_D_OUT].astype(jnp.float32)


# ----------------------------------------------------------------------------
# Reference + params
# ----------------------------------------------------------------------------
def _reference(x, params):
    h1 = jax.nn.relu(x @ params["w1"].T + params["b1"])
    h2 = jax.nn.relu(h1 @ params["w2"].T + params["b2"])
    logits = h2 @ params["w3"].T + params["b3"]
    return jax.nn.softmax(logits, axis=-1)


def init_params(key):
    """Deterministic init matching the torch Linear shapes (weight=(out,in))."""
    def u(k, shape, fan_in):
        bound = 1.0 / jnp.sqrt(fan_in)
        return jax.random.uniform(k, shape, jnp.float32, -bound, bound)

    ks = jax.random.split(key, 6)
    return {
        "w1": u(ks[0], (_H1, _D_IN), _D_IN), "b1": u(ks[1], (_H1,), _D_IN),
        "w2": u(ks[2], (_H2, _H1), _H1),     "b2": u(ks[3], (_H2,), _H1),
        "w3": u(ks[4], (_D_OUT, _H2), _H2),  "b3": u(ks[5], (_D_OUT,), _H2),
    }


if __name__ == "__main__":
    key = jax.random.PRNGKey(0)
    k_x, k_p = jax.random.split(key)
    batch = 2
    x = jax.random.normal(k_x, (batch, _D_IN), dtype=jnp.float32)
    params = init_params(k_p)

    prepped = jax.tree_util.tree_map(jnp.asarray, prepare_params(params))
    fwd = jax.jit(mnist_forward)
    out = jax.block_until_ready(fwd(x, prepped))

    ref = _reference(x, params)
    assert out.shape == (batch, _D_OUT)
    # bf16 matmul inputs / bf16 writeback with f32 accumulation and f32 softmax
    # stay well within these tolerances on softmax probabilities.
    assert jnp.max(jnp.abs(out - ref)) < 5e-2
    assert jnp.all(jnp.abs(jnp.sum(out, axis=-1) - 1.0) < 2e-2)
    print("KERNEL_OK")
</pallas_src>

<mosaic_0001>
module attributes {stable_mosaic.version = 11 : i64} {
  func.func @_mlp_fused_kernel(%arg0: i32, %arg1: memref<16x784xf32, #tpu.memory_space<vmem>>, %arg2: memref<784x128xbf16, #tpu.memory_space<vmem>>, %arg3: memref<1x128xf32, #tpu.memory_space<vmem>>, %arg4: memref<128x256xbf16, #tpu.memory_space<vmem>>, %arg5: memref<1x256xf32, #tpu.memory_space<vmem>>, %arg6: memref<256x128xbf16, #tpu.memory_space<vmem>>, %arg7: memref<1x128xf32, #tpu.memory_space<vmem>>, %arg8: memref<16x128xbf16, #tpu.memory_space<vmem>>) attributes {dimension_semantics = [#tpu.dimension_semantics<parallel>], iteration_bounds = array<i64: 1>, scalar_prefetch = 0 : i64, scratch_operands = 0 : i64, tpu.core_type = #tpu.core_type<tc>, window_params = [{transform_indices = @transform_0, window_bounds = array<i64: 16, 784>}, {pipeline_mode = #tpu.pipeline_mode<synchronous>, transform_indices = @transform_1, window_bounds = array<i64: 784, 128>}, {pipeline_mode = #tpu.pipeline_mode<synchronous>, transform_indices = @transform_2, window_bounds = array<i64: 1, 128>}, {pipeline_mode = #tpu.pipeline_mode<synchronous>, transform_indices = @transform_3, window_bounds = array<i64: 128, 256>}, {pipeline_mode = #tpu.pipeline_mode<synchronous>, transform_indices = @transform_4, window_bounds = array<i64: 1, 256>}, {pipeline_mode = #tpu.pipeline_mode<synchronous>, transform_indices = @transform_5, window_bounds = array<i64: 256, 128>}, {pipeline_mode = #tpu.pipeline_mode<synchronous>, transform_indices = @transform_6, window_bounds = array<i64: 1, 128>}, {transform_indices = @transform_7, window_bounds = array<i64: 16, 128>}]} {
    %c0 = arith.constant 0 : index
    %c0_0 = arith.constant 0 : index
    %0 = vector.load %arg1[%c0, %c0_0] : memref<16x784xf32, #tpu.memory_space<vmem>>, vector<16x784xf32>
    %1 = arith.truncf %0 : vector<16x784xf32> to vector<16x784xbf16>
    %c0_1 = arith.constant 0 : index
    %c0_2 = arith.constant 0 : index
    %2 = vector.load %arg2[%c0_1, %c0_2] : memref<784x128xbf16, #tpu.memory_space<vmem>>, vector<784x128xbf16>
    %cst = arith.constant dense<0.000000e+00> : vector<16x128xf32>
    %3 = tpu.matmul %1, %2, %cst {dimension_numbers = #tpu.dot_dimension_numbers<[1], [0], [0], [1], [0, 0, 1, 1], [], []>} : vector<16x784xbf16>, vector<784x128xbf16>, vector<16x128xf32> -> vector<16x128xf32>
    %c0_3 = arith.constant 0 : index
    %c0_4 = arith.constant 0 : index
    %4 = vector.load %arg3[%c0_3, %c0_4] : memref<1x128xf32, #tpu.memory_space<vmem>>, vector<1x128xf32>
    %5 = vector.broadcast %4 : vector<1x128xf32> to vector<16x128xf32>
    %6 = arith.addf %3, %5 : vector<16x128xf32>
    %cst_5 = arith.constant 0.000000e+00 : f32
    %7 = vector.broadcast %cst_5 : f32 to vector<16x128xf32>
    %8 = arith.maximumf %6, %7 : vector<16x128xf32>
    %9 = arith.truncf %8 : vector<16x128xf32> to vector<16x128xbf16>
    %c0_6 = arith.constant 0 : index
    %c0_7 = arith.constant 0 : index
    %10 = vector.load %arg4[%c0_6, %c0_7] : memref<128x256xbf16, #tpu.memory_space<vmem>>, vector<128x256xbf16>
    %cst_8 = arith.constant dense<0.000000e+00> : vector<16x256xf32>
    %11 = tpu.matmul %9, %10, %cst_8 {dimension_numbers = #tpu.dot_dimension_numbers<[1], [0], [0], [1], [0, 0, 1, 1], [], []>} : vector<16x128xbf16>, vector<128x256xbf16>, vector<16x256xf32> -> vector<16x256xf32>
    %c0_9 = arith.constant 0 : index
    %c0_10 = arith.constant 0 : index
    %12 = vector.load %arg5[%c0_9, %c0_10] : memref<1x256xf32, #tpu.memory_space<vmem>>, vector<1x256xf32>
    %13 = vector.broadcast %12 : vector<1x256xf32> to vector<16x256xf32>
    %14 = arith.addf %11, %13 : vector<16x256xf32>
    %cst_11 = arith.constant 0.000000e+00 : f32
    %15 = vector.broadcast %cst_11 : f32 to vector<16x256xf32>
    %16 = arith.maximumf %14, %15 : vector<16x256xf32>
    %17 = arith.truncf %16 : vector<16x256xf32> to vector<16x256xbf16>
    %c0_12 = arith.constant 0 : index
    %c0_13 = arith.constant 0 : index
    %18 = vector.load %arg6[%c0_12, %c0_13] : memref<256x128xbf16, #tpu.memory_space<vmem>>, vector<256x128xbf16>
    %cst_14 = arith.constant dense<0.000000e+00> : vector<16x128xf32>
    %19 = tpu.matmul %17, %18, %cst_14 {dimension_numbers = #tpu.dot_dimension_numbers<[1], [0], [0], [1], [0, 0, 1, 1], [], []>} : vector<16x256xbf16>, vector<256x128xbf16>, vector<16x128xf32> -> vector<16x128xf32>
    %c0_15 = arith.constant 0 : index
    %c0_16 = arith.constant 0 : index
    %20 = vector.load %arg7[%c0_15, %c0_16] : memref<1x128xf32, #tpu.memory_space<vmem>>, vector<1x128xf32>
    %21 = vector.broadcast %20 : vector<1x128xf32> to vector<16x128xf32>
    %22 = arith.addf %19, %21 : vector<16x128xf32>
    %23 = tpu.iota {dimensions = array<i32: 1>} : vector<16x128xi32>
    %c10_i32 = arith.constant 10 : i32
    %24 = vector.broadcast %c10_i32 : i32 to vector<16x128xi32>
    %25 = arith.cmpi slt, %23, %24 : vector<16x128xi32>
    %cst_17 = arith.constant -1.000000e+30 : f32
    %26 = vector.broadcast %cst_17 : f32 to vector<16x128xf32>
    %27 = arith.select %25, %22, %26 : vector<16x128xi1>, vector<16x128xf32>
    %cst_18 = arith.constant dense<0xFF800000> : vector<16xf32>
    %28 = vector.multi_reduction <maximumf>, %27, %cst_18 [1] : vector<16x128xf32> to vector<16xf32>
    %29 = vector.shape_cast %28 : vector<16xf32> to vector<16x1xf32>
    %30 = vector.broadcast %29 : vector<16x1xf32> to vector<16x128xf32>
    %31 = arith.subf %27, %30 : vector<16x128xf32>
    %32 = math.exp %31 : vector<16x128xf32>
    %cst_19 = arith.constant dense<0.000000e+00> : vector<16xf32>
    %33 = vector.multi_reduction <add>, %32, %cst_19 [1] : vector<16x128xf32> to vector<16xf32>
    %34 = vector.shape_cast %33 : vector<16xf32> to vector<16x1xf32>
    %35 = tpu.reciprocal %34 {approx = true} : vector<16x1xf32> -> vector<16x1xf32>
    %36 = vector.broadcast %35 : vector<16x1xf32> to vector<16x128xf32>
    %37 = arith.mulf %32, %36 : vector<16x128xf32>
    %38 = arith.truncf %37 : vector<16x128xf32> to vector<16x128xbf16>
    %c0_20 = arith.constant 0 : index
    %c0_21 = arith.constant 0 : index
    %39 = vector.load %arg8[%c0_20, %c0_21] : memref<16x128xbf16, #tpu.memory_space<vmem>>, vector<16x128xbf16>
    tpu.vector_store %arg8[%c0_20, %c0_21], %38 {strides = array<i32>} : memref<16x128xbf16, #tpu.memory_space<vmem>>, vector<16x128xbf16>,
    return
  }
  func.func @transform_0(%arg0: i32) -> (i32, i32) {
    %c0_i32 = arith.constant 0 : i32
    %c0_i32_0 = arith.constant 0 : i32
    return %arg0, %c0_i32 : i32, i32
  }
  func.func @transform_1(%arg0: i32) -> (i32, i32) {
    %c0_i32 = arith.constant 0 : i32
    %c0_i32_0 = arith.constant 0 : i32
    %c0_i32_1 = arith.constant 0 : i32
    return %c0_i32, %c0_i32_0 : i32, i32
  }
  func.func @transform_2(%arg0: i32) -> (i32, i32) {
    %c0_i32 = arith.constant 0 : i32
    %c0_i32_0 = arith.constant 0 : i32
    %c0_i32_1 = arith.constant 0 : i32
    return %c0_i32, %c0_i32_0 : i32, i32
  }
  func.func @transform_3(%arg0: i32) -> (i32, i32) {
    %c0_i32 = arith.constant 0 : i32
    %c0_i32_0 = arith.constant 0 : i32
    %c0_i32_1 = arith.constant 0 : i32
    return %c0_i32, %c0_i32_0 : i32, i32
  }
  func.func @transform_4(%arg0: i32) -> (i32, i32) {
    %c0_i32 = arith.constant 0 : i32
    %c0_i32_0 = arith.constant 0 : i32
    %c0_i32_1 = arith.constant 0 : i32
    return %c0_i32, %c0_i32_0 : i32, i32
  }
  func.func @transform_5(%arg0: i32) -> (i32, i32) {
    %c0_i32 = arith.constant 0 : i32
    %c0_i32_0 = arith.constant 0 : i32
    %c0_i32_1 = arith.constant 0 : i32
    return %c0_i32, %c0_i32_0 : i32, i32
  }
  func.func @transform_6(%arg0: i32) -> (i32, i32) {
    %c0_i32 = arith.constant 0 : i32
    %c0_i32_0 = arith.constant 0 : i32
    %c0_i32_1 = arith.constant 0 : i32
    return %c0_i32, %c0_i32_0 : i32, i32
  }
  func.func @transform_7(%arg0: i32) -> (i32, i32) {
    %c0_i32 = arith.constant 0 : i32
    %c0_i32_0 = arith.constant 0 : i32
    return %arg0, %c0_i32 : i32, i32
  }
}

</mosaic_0001>

<llo_original>
// kernel: mnist_forward.1
$region0: #{mnist_forward.1}
  #allocation0 [shape = 'u32[]', space=smem, size = 0x4, offset = 0x4, fixed_abs, tag = 'smem constant byte address 0x4 - core index']
  #allocation1 [shape = 'u32[72,128]{1,0:T(1,128)}', space=vmem, size = 0x9000, scoped, tag = 'internal scratch']
  %s0 = inlined_call_operand.vmem [shape: f32[16,784], index: 0, kind: input, shape index: {}]
  %s1 = inlined_call_operand.hbm [shape: bf16[784,128], index: 1, kind: input, shape index: {}]
  %s2 = inlined_call_operand.vmem [shape: f32[1,128], index: 2, kind: input, shape index: {}]
  %s3 = inlined_call_operand.vmem [shape: bf16[128,256], index: 3, kind: input, shape index: {}]
  %s4 = inlined_call_operand.vmem [shape: f32[1,256], index: 4, kind: input, shape index: {}]
  %s5 = inlined_call_operand.hbm [shape: bf16[256,128], index: 5, kind: input, shape index: {}]
  %s6 = inlined_call_operand.hbm [shape: f32[1,128], index: 6, kind: input, shape index: {}]
  %s7 = inlined_call_operand.vmem [shape: bf16[16,128], index: 7, kind: output, shape index: {}]
  %s8 = sld [smem:[#allocation0]]
  $region50: #{mnist_forward.1} parent=0
    _
  %s10 = ssub.s32 1, %s8
  %s11 = scalar_select 0, %s10, %s8
  $region1: #{mnist_forward.1} parent=0
    #allocation2 [shape = 'u8[200704]{0}', space=vmem, size = 0x31000, scoped, tag = 'input window, operand 1, single buffered']
    #allocation3 [shape = 's32[1]{0}', space=sflag, size = 0x4, scoped, tag = 'scoped memory for mnist_forward.1']
    #allocation4 [shape = 'u8[65536]{0}', space=vmem, size = 0x10000, scoped, tag = 'input window, operand 5, single buffered']
    #allocation5 [shape = 's32[1]{0}', space=sflag, size = 0x4, scoped, tag = 'scoped memory for mnist_forward.1']
    #allocation6 [shape = 'u8[512]{0}', space=vmem, size = 0x400, scoped, tag = 'input window, operand 6, single buffered']
    %12 = vsyncpa [#allocation3], 0
    %13 = vsyncpa [#allocation5], 0
    // Predicated region
    $region2: #{mnist_forward.1} parent=1 // pred_check
      _
    $region3: #{mnist_forward.1} parent=1 // pred_check_branch
      %15 = sbr.rel (0) target = $region5
    $region4: #{mnist_forward.1} parent=1 // pred_region
      _
    $region5: #{mnist_forward.1} parent=1 // pred_fallthru
      _
    // Predicated region
    $region6: #{mnist_forward.1} parent=1 // pred_check
      _
    $region7: #{mnist_forward.1} parent=1 // pred_check_branch
      %17 = sbr.rel (0) target = $region9
    $region8: #{mnist_forward.1} parent=1 // pred_region
      %19 = vsyncadd [#allocation3], 0
      %s20 = sshll.u32 %s1, 4
      %s21 = int_to_ptr.hbm [resolvable:$true] %s20
      %s22 = sshll.u32 [#allocation2], 4
      %s23 = int_to_ptr.vmem [resolvable:$true] %s22
      %28 = dma.hbm_to_vmem [thread:$0]  %s21, 6272, %s23, [#allocation3], 64, 64, 4
    $region9: #{mnist_forward.1} parent=1 // pred_fallthru
      _
    // Predicated region
    $region10: #{mnist_forward.1} parent=1 // pred_check
      _
    $region11: #{mnist_forward.1} parent=1 // pred_check_branch
      %30 = sbr.rel (0) target = $region13
    $region12: #{mnist_forward.1} parent=1 // pred_region
      _
    $region13: #{mnist_forward.1} parent=1 // pred_fallthru
      _
    // Predicated region
    $region14: #{mnist_forward.1} parent=1 // pred_check
      _
    $region15: #{mnist_forward.1} parent=1 // pred_check_branch
      %32 = sbr.rel (0) target = $region17
    $region16: #{mnist_forward.1} parent=1 // pred_region
      _
    $region17: #{mnist_forward.1} parent=1 // pred_fallthru
      _
    // Predicated region
    $region18: #{mnist_forward.1} parent=1 // pred_check
      _
    $region19: #{mnist_forward.1} parent=1 // pred_check_branch
      %34 = sbr.rel (0) target = $region21
    $region20: #{mnist_forward.1} parent=1 // pred_region
      _
    $region21: #{mnist_forward.1} parent=1 // pred_fallthru
      _
    // Predicated region
    $region22: #{mnist_forward.1} parent=1 // pred_check
      _
    $region23: #{mnist_forward.1} parent=1 // pred_check_branch
      %36 = sbr.rel (0) target = $region25
    $region24: #{mnist_forward.1} parent=1 // pred_region
      %38 = vsyncadd [#allocation5], 0
      %s39 = sshll.u32 %s5, 4
      %s40 = int_to_ptr.hbm [resolvable:$true] %s39
      %s41 = sshll.u32 [#allocation4], 4
      %s42 = int_to_ptr.vmem [resolvable:$true] %s41
      %47 = dma.hbm_to_vmem [thread:$0]  %s40, 2048, %s42, [#allocation5], 64, 64, 4
    $region25: #{mnist_forward.1} parent=1 // pred_fallthru
      _
    // Predicated region
    $region26: #{mnist_forward.1} parent=1 // pred_check
      _
    $region27: #{mnist_forward.1} parent=1 // pred_check_branch
      %49 = sbr.rel (0) target = $region29
    $region28: #{mnist_forward.1} parent=1 // pred_region
      %51 = vsyncadd [#allocation5], 0
      %s53 = sshll.u32 %s6, 4
      %s54 = int_to_ptr.hbm [resolvable:$true] %s53
      %s55 = sshll.u32 [#allocation6], 4
      %s56 = int_to_ptr.vmem [resolvable:$true] %s55
      %58 = dma.hbm_to_vmem [thread:$0]  %s54, 16, %s56, [#allocation5]
    $region29: #{mnist_forward.1} parent=1 // pred_fallthru
      _
    // Predicated region
    $region30: #{mnist_forward.1} parent=1 // pred_check
      _
    $region31: #{mnist_forward.1} parent=1 // pred_check_branch
      %60 = sbr.rel (0) target = $region33
    $region32: #{mnist_forward.1} parent=1 // pred_region
      %62 = dma.done [#allocation3], 6272
    $region33: #{mnist_forward.1} parent=1 // pred_fallthru
      _
    // Predicated region
    $region34: #{mnist_forward.1} parent=1 // pred_check
      _
    $region35: #{mnist_forward.1} parent=1 // pred_check_branch
      %64 = sbr.rel (0) target = $region37
    $region36: #{mnist_forward.1} parent=1 // pred_region
      %66 = dma.done [#allocation5], 2048
    $region37: #{mnist_forward.1} parent=1 // pred_fallthru
      _
    // Predicated region
    $region38: #{mnist_forward.1} parent=1 // pred_check
      _
    $region39: #{mnist_forward.1} parent=1 // pred_check_branch
      %68 = sbr.rel (0) target = $region41
    $region40: #{mnist_forward.1} parent=1 // pred_region
      %70 = dma.done [#allocation5], 16
    $region41: #{mnist_forward.1} parent=1 // pred_fallthru
      _
    %v72 = vld [vmem:[%s0] sm:$0xff]
    %v73 = vld [vmem:[%s0 + $0x8] sm:$0xff]
    %v74 = vld [vmem:[%s0 + $0x10] sm:$0xff]
    %v75 = vld [vmem:[%s0 + $0x18] sm:$0xff]
    %v76 = vld [vmem:[%s0 + $0x20] sm:$0xff]
    %v77 = vld [vmem:[%s0 + $0x28] sm:$0xff]
    %v78 = vld [vmem:[%s0 + $0x30] sm:$0xff]
    %v79 = vld [vmem:[%s0 + $0x38] sm:$0xff]
    %v80 = vld [vmem:[%s0 + $0x40] sm:$0xff]
    %v81 = vld [vmem:[%s0 + $0x48] sm:$0xff]
    %v82 = vld [vmem:[%s0 + $0x50] sm:$0xff]
    %v83 = vld [vmem:[%s0 + $0x58] sm:$0xff]
    %v84 = vld [vmem:[%s0 + $0x60] sm:$0xff]
    %v85 = vld [vmem:[%s0 + $0x68] sm:$0xff]
    %v86 = vpack.c.bf16 %v79, %v72
    %v87 = vpack.c.bf16 %v80, %v73
    %v88 = vpack.c.bf16 %v81, %v74
    %v89 = vpack.c.bf16 %v82, %v75
    %v90 = vpack.c.bf16 %v83, %v76
    %v91 = vpack.c.bf16 %v84, %v77
    %v92 = vpack.c.bf16 %v85, %v78
    %v93 = vld [vmem:[#allocation2] sm:$0xf]
    %v94 = vld [vmem:[#allocation2 + $0x4] sm:$0xf]
    %v95 = vld [vmem:[#allocation2 + $0x8] sm:$0xf]
    %v96 = vld [vmem:[#allocation2 + $0xc] sm:$0xf]
    %v97 = vld [vmem:[#allocation2 + $0x10] sm:$0xf]
    %v98 = vld [vmem:[#allocation2 + $0x14] sm:$0xf]
    %v99 = vld [vmem:[#allocation2 + $0x18] sm:$0xf]
    %v100 = vld [vmem:[#allocation2 + $0x1c] sm:$0xf]
    %v101 = vld [vmem:[#allocation2 + $0x20] sm:$0xf]
    %v102 = vld [vmem:[#allocation2 + $0x24] sm:$0xf]
    %v103 = vld [vmem:[#allocation2 + $0x28] sm:$0xf]
    %v104 = vld [vmem:[#allocation2 + $0x2c] sm:$0xf]
    %v105 = vld [vmem:[#allocation2 + $0x30] sm:$0xf]
    %v106 = vld [vmem:[#allocation2 + $0x34] sm:$0xf]
    %v107 = vld [vmem:[#allocation2 + $0x38] sm:$0xf]
    %v108 = vld [vmem:[#allocation2 + $0x3c] sm:$0xf]
    %v109 = vld [vmem:[#allocation2 + $0x40] sm:$0xf]
    %v110 = vld [vmem:[#allocation2 + $0x44] sm:$0xf]
    %v111 = vld [vmem:[#allocation2 + $0x48] sm:$0xf]
    %v112 = vld [vmem:[#allocation2 + $0x4c] sm:$0xf]
    %v113 = vld [vmem:[#allocation2 + $0x50] sm:$0xf]
    %v114 = vld [vmem:[#allocation2 + $0x54] sm:$0xf]
    %v115 = vld [vmem:[#allocation2 + $0x58] sm:$0xf]
    %v116 = vld [vmem:[#allocation2 + $0x5c] sm:$0xf]
    %v117 = vld [vmem:[#allocation2 + $0x60] sm:$0xf]
    %v118 = vld [vmem:[#allocation2 + $0x64] sm:$0xf]
    %v119 = vld [vmem:[#allocation2 + $0x68] sm:$0xf]
    %v120 = vld [vmem:[#allocation2 + $0x6c] sm:$0xf]
    %v121 = vld [vmem:[#allocation2 + $0x70] sm:$0xf]
    %v122 = vld [vmem:[#allocation2 + $0x74] sm:$0xf]
    %v123 = vld [vmem:[#allocation2 + $0x78] sm:$0xf]
    %v124 = vld [vmem:[#allocation2 + $0x7c] sm:$0xf]
    %v125 = vld [vmem:[#allocation2 + $0x80] sm:$0xf]
    %v126 = vld [vmem:[#allocation2 + $0x84] sm:$0xf]
    %v127 = vld [vmem:[#allocation2 + $0x88] sm:$0xf]
    %v128 = vld [vmem:[#allocation2 + $0x8c] sm:$0xf]
    %v129 = vld [vmem:[#allocation2 + $0x90] sm:$0xf]
    %v130 = vld [vmem:[#allocation2 + $0x94] sm:$0xf]
    %v131 = vld [vmem:[#allocation2 + $0x98] sm:$0xf]
    %v132 = vld [vmem:[#allocation2 + $0x9c] sm:$0xf]
    %v133 = vld [vmem:[#allocation2 + $0xa0] sm:$0xf]
    %v134 = vld [vmem:[#allocation2 + $0xa4] sm:$0xf]
    %v135 = vld [vmem:[#allocation2 + $0xa8] sm:$0xf]
    %v136 = vld [vmem:[#allocation2 + $0xac] sm:$0xf]
    %v137 = vld [vmem:[#allocation2 + $0xb0] sm:$0xf]
    %v138 = vld [vmem:[#allocation2 + $0xb4] sm:$0xf]
    %v139 = vld [vmem:[#allocation2 + $0xb8] sm:$0xf]
    %v140 = vld [vmem:[#allocation2 + $0xbc] sm:$0xf]
    %v141 = vld [vmem:[#allocation2 + $0xc0] sm:$0xf]
    %v142 = vld [vmem:[#allocation2 + $0xc4] sm:$0xf]
    %v143 = vld [vmem:[#allocation2 + $0xc8] sm:$0xf]
    %v144 = vld [vmem:[#allocation2 + $0xcc] sm:$0xf]
    %v145 = vld [vmem:[#allocation2 + $0xd0] sm:$0xf]
    %v146 = vld [vmem:[#allocation2 + $0xd4] sm:$0xf]
    %v147 = vld [vmem:[#allocation2 + $0xd8] sm:$0xf]
    %v148 = vld [vmem:[#allocation2 + $0xdc] sm:$0xf]
    %v149 = vld [vmem:[#allocation2 + $0xe0] sm:$0xf]
    %v150 = vld [vmem:[#allocation2 + $0xe4] sm:$0xf]
    %v151 = vld [vmem:[#allocation2 + $0xe8] sm:$0xf]
    %v152 = vld [vmem:[#allocation2 + $0xec] sm:$0xf]
    %v153 = vld [vmem:[#allocation2 + $0xf0] sm:$0xf]
    %v154 = vld [vmem:[#allocation2 + $0xf4] sm:$0xf]
    %v155 = vld [vmem:[#allocation2 + $0xf8] sm:$0xf]
    %v156 = vld [vmem:[#allocation2 + $0xfc] sm:$0xf]
    %v157 = vld [vmem:[#allocation2 + $0x100] sm:$0xf]
    %v158 = vld [vmem:[#allocation2 + $0x104] sm:$0xf]
    %v159 = vld [vmem:[#allocation2 + $0x108] sm:$0xf]
    %v160 = vld [vmem:[#allocation2 + $0x10c] sm:$0xf]
    %v161 = vld [vmem:[#allocation2 + $0x110] sm:$0xf]
    %v162 = vld [vmem:[#allocation2 + $0x114] sm:$0xf]
    %v163 = vld [vmem:[#allocation2 + $0x118] sm:$0xf]
    %v164 = vld [vmem:[#allocation2 + $0x11c] sm:$0xf]
    %v165 = vld [vmem:[#allocation2 + $0x120] sm:$0xf]
    %v166 = vld [vmem:[#allocation2 + $0x124] sm:$0xf]
    %v167 = vld [vmem:[#allocation2 + $0x128] sm:$0xf]
    %v168 = vld [vmem:[#allocation2 + $0x12c] sm:$0xf]
    %v169 = vld [vmem:[#allocation2 + $0x130] sm:$0xf]
    %v170 = vld [vmem:[#allocation2 + $0x134] sm:$0xf]
    %v171 = vld [vmem:[#allocation2 + $0x138] sm:$0xf]
    %v172 = vld [vmem:[#allocation2 + $0x13c] sm:$0xf]
    %v173 = vld [vmem:[#allocation2 + $0x140] sm:$0xf]
    %v174 = vld [vmem:[#allocation2 + $0x144] sm:$0xf]
    %v175 = vld [vmem:[#allocation2 + $0x148] sm:$0xf]
    %v176 = vld [vmem:[#allocation2 + $0x14c] sm:$0xf]
    %v177 = vld [vmem:[#allocation2 + $0x150] sm:$0xf]
    %v178 = vld [vmem:[#allocation2 + $0x154] sm:$0xf]
    %v179 = vld [vmem:[#allocation2 + $0x158] sm:$0xf]
    %v180 = vld [vmem:[#allocation2 + $0x15c] sm:$0xf]
    %v181 = vld [vmem:[#allocation2 + $0x160] sm:$0xf]
    %v182 = vld [vmem:[#allocation2 + $0x164] sm:$0xf]
    %v183 = vld [vmem:[#allocation2 + $0x168] sm:$0xf]
    %v184 = vld [vmem:[#allocation2 + $0x16c] sm:$0xf]
    %v185 = vld [vmem:[#allocation2 + $0x170] sm:$0xf]
    %v186 = vld [vmem:[#allocation2 + $0x174] sm:$0xf]
    %v187 = vld [vmem:[#allocation2 + $0x178] sm:$0xf]
    %v188 = vld [vmem:[#allocation2 + $0x17c] sm:$0xf]
    %v189 = vld [vmem:[#allocation2 + $0x180] sm:$0xf]
    %v190 = vld [vmem:[#allocation2 + $0x184] sm:$0xf]
    %v191 = vld [vmem:[%s2] sm:$0x1]
    %v193 = vperm.slane %v191, 0
    %v293 = vunpack.c.l.b16 %v93
    %v294 = vunpack.c.l.b16 %v94
    %v295 = vunpack.c.l.b16 %v95
    %v296 = vunpack.c.l.b16 %v96
    %v297 = vunpack.c.l.b16 %v97
    %v298 = vunpack.c.l.b16 %v98
    %v299 = vunpack.c.l.b16 %v99
    %v300 = vunpack.c.l.b16 %v100
    %v301 = vunpack.c.l.b16 %v101
    %v302 = vunpack.c.l.b16 %v102
    %v303 = vunpack.c.l.b16 %v103
    %v304 = vunpack.c.l.b16 %v104
    %v305 = vunpack.c.l.b16 %v105
    %v306 = vunpack.c.l.b16 %v106
    %v307 = vunpack.c.l.b16 %v107
    %v308 = vunpack.c.l.b16 %v108
    %v309 = vunpack.c.l.b16 %v109
    %v310 = vunpack.c.l.b16 %v110
    %v311 = vunpack.c.l.b16 %v111
    %v312 = vunpack.c.l.b16 %v112
    %v313 = vunpack.c.l.b16 %v113
    %v314 = vunpack.c.l.b16 %v114
    %v315 = vunpack.c.l.b16 %v115
    %v316 = vunpack.c.l.b16 %v116
    %v317 = vunpack.c.l.b16 %v117
    %v318 = vunpack.c.l.b16 %v118
    %v319 = vunpack.c.l.b16 %v119
    %v320 = vunpack.c.l.b16 %v120
    %v321 = vunpack.c.l.b16 %v121
    %v322 = vunpack.c.l.b16 %v122
    %v323 = vunpack.c.l.b16 %v123
    %v324 = vunpack.c.l.b16 %v124
    %v325 = vunpack.c.l.b16 %v125
    %v326 = vunpack.c.l.b16 %v126
    %v327 = vunpack.c.l.b16 %v127
    %v328 = vunpack.c.l.b16 %v128
    %v329 = vunpack.c.l.b16 %v129
    %v330 = vunpack.c.l.b16 %v130
    %v331 = vunpack.c.l.b16 %v131
    %v332 = vunpack.c.l.b16 %v132
    %v333 = vunpack.c.l.b16 %v133
    %v334 = vunpack.c.l.b16 %v134
    %v335 = vunpack.c.l.b16 %v135
    %v336 = vunpack.c.l.b16 %v136
    %v337 = vunpack.c.l.b16 %v137
    %v338 = vunpack.c.l.b16 %v138
    %v339 = vunpack.c.l.b16 %v139
    %v340 = vunpack.c.l.b16 %v140
    %v341 = vunpack.c.l.b16 %v141
    %v342 = vunpack.c.l.b16 %v142
    %v343 = vunpack.c.l.b16 %v143
    %v344 = vunpack.c.l.b16 %v144
    %v345 = vunpack.c.l.b16 %v145
    %v346 = vunpack.c.l.b16 %v146
    %v347 = vunpack.c.l.b16 %v147
    %v348 = vunpack.c.l.b16 %v148
    %v349 = vunpack.c.l.b16 %v149
    %v350 = vunpack.c.l.b16 %v150
    %v351 = vunpack.c.l.b16 %v151
    %v352 = vunpack.c.l.b16 %v152
    %v353 = vunpack.c.l.b16 %v153
    %v354 = vunpack.c.l.b16 %v154
    %v355 = vunpack.c.l.b16 %v155
    %v356 = vunpack.c.l.b16 %v156
    %v357 = vunpack.c.l.b16 %v157
    %v358 = vunpack.c.l.b16 %v158
    %v359 = vunpack.c.l.b16 %v159
    %v360 = vunpack.c.l.b16 %v160
    %v361 = vunpack.c.l.b16 %v161
    %v362 = vunpack.c.l.b16 %v162
    %v363 = vunpack.c.l.b16 %v163
    %v364 = vunpack.c.l.b16 %v164
    %v365 = vunpack.c.l.b16 %v165
    %v366 = vunpack.c.l.b16 %v166
    %v367 = vunpack.c.l.b16 %v167
    %v368 = vunpack.c.l.b16 %v168
    %v369 = vunpack.c.l.b16 %v169
    %v370 = vunpack.c.l.b16 %v170
    %v371 = vunpack.c.l.b16 %v171
    %v372 = vunpack.c.l.b16 %v172
    %v373 = vunpack.c.l.b16 %v173
    %v374 = vunpack.c.l.b16 %v174
    %v375 = vunpack.c.l.b16 %v175
    %v376 = vunpack.c.l.b16 %v176
    %v377 = vunpack.c.l.b16 %v177
    %v378 = vunpack.c.l.b16 %v178
    %v379 = vunpack.c.l.b16 %v179
    %v380 = vunpack.c.l.b16 %v180
    %v381 = vunpack.c.l.b16 %v181
    %v382 = vunpack.c.l.b16 %v182
    %v383 = vunpack.c.l.b16 %v183
    %v384 = vunpack.c.l.b16 %v184
    %v385 = vunpack.c.l.b16 %v185
    %v386 = vunpack.c.l.b16 %v186
    %v387 = vunpack.c.l.b16 %v187
    %v388 = vunpack.c.l.b16 %v188
    %v389 = vunpack.c.l.b16 %v189
    %v390 = vunpack.c.l.b16 %v190
    %v391 = vpack.c.b16 %v294, %v293
    %v392 = vpack.c.b16 %v296, %v295
    %v393 = vpack.c.b16 %v298, %v297
    %v394 = vpack.c.b16 %v300, %v299
    %v395 = vpack.c.b16 %v302, %v301
    %v396 = vpack.c.b16 %v304, %v303
    %v397 = vpack.c.b16 %v306, %v305
    %v398 = vpack.c.b16 %v308, %v307
    %v399 = vpack.c.b16 %v310, %v309
    %v400 = vpack.c.b16 %v312, %v311
    %v401 = vpack.c.b16 %v314, %v313
    %v402 = vpack.c.b16 %v316, %v315
    %v403 = vpack.c.b16 %v318, %v317
    %v404 = vpack.c.b16 %v320, %v319
    %v405 = vpack.c.b16 %v322, %v321
    %v406 = vpack.c.b16 %v324, %v323
    %v407 = vpack.c.b16 %v326, %v325
    %v408 = vpack.c.b16 %v328, %v327
    %v409 = vpack.c.b16 %v330, %v329
    %v410 = vpack.c.b16 %v332, %v331
    %v411 = vpack.c.b16 %v334, %v333
    %v412 = vpack.c.b16 %v336, %v335
    %v413 = vpack.c.b16 %v338, %v337
    %v414 = vpack.c.b16 %v340, %v339
    %v415 = vpack.c.b16 %v342, %v341
    %v416 = vpack.c.b16 %v344, %v343
    %v417 = vpack.c.b16 %v346, %v345
    %v418 = vpack.c.b16 %v348, %v347
    %v419 = vpack.c.b16 %v350, %v349
    %v420 = vpack.c.b16 %v352, %v351
    %v421 = vpack.c.b16 %v354, %v353
    %v422 = vpack.c.b16 %v356, %v355
    %v423 = vpack.c.b16 %v358, %v357
    %v424 = vpack.c.b16 %v360, %v359
    %v425 = vpack.c.b16 %v362, %v361
    %v426 = vpack.c.b16 %v364, %v363
    %v427 = vpack.c.b16 %v366, %v365
    %v428 = vpack.c.b16 %v368, %v367
    %v429 = vpack.c.b16 %v370, %v369
    %v430 = vpack.c.b16 %v372, %v371
    %v431 = vpack.c.b16 %v374, %v373
    %v432 = vpack.c.b16 %v376, %v375
    %v433 = vpack.c.b16 %v378, %v377
    %v434 = vpack.c.b16 %v380, %v379
    %v435 = vpack.c.b16 %v382, %v381
    %v436 = vpack.c.b16 %v384, %v383
    %v437 = vpack.c.b16 %v386, %v385
    %v438 = vpack.c.b16 %v388, %v387
    %v439 = vpack.c.b16 %v390, %v389
    %vm489 = vcmask 130048
    %v491 = vsel %vm489, %v92, 0
    %493 = vmatpush.bf16.msra.mxu0 %v398
    %494 = vmatpush.bf16.msra.mxu0 %v397
    %495 = vmatpush.bf16.msra.mxu0 %v396
    %496 = vmatpush.bf16.msra.mxu0 %v395
    %497 = vmatpush.bf16.msra.mxu0 %v394
    %498 = vmatpush.bf16.msra.mxu0 %v393
    %499 = vmatpush.bf16.msra.mxu0 %v392
    %500 = vmatpush.bf16.msra.mxu0 %v391
    %501 = vmatmul.bf16.gmra.mxu0 %v86
    %v502 = vpop.f32.mrf.mxu0
    %v503 = vadd.f32 %v193, %v502
    %v504 = vpop.f32.mrf.mxu0
    %v505 = vadd.f32 %v193, %v504
    %506 = vdwg.mxu0
    %507 = vmatpush.bf16.msra.mxu0 %v406
    %508 = vmatpush.bf16.msra.mxu0 %v405
    %509 = vmatpush.bf16.msra.mxu0 %v404
    %510 = vmatpush.bf16.msra.mxu0 %v403
    %511 = vmatpush.bf16.msra.mxu0 %v402
    %512 = vmatpush.bf16.msra.mxu0 %v401
    %513 = vmatpush.bf16.msra.mxu0 %v400
    %514 = vmatpush.bf16.msra.mxu0 %v399
    %515 = vmatmul.bf16.gmra.mxu0 %v87
    %v516 = vpop.f32.mrf.mxu0
    %v517 = vadd.f32 %v503, %v516
    %v518 = vpop.f32.mrf.mxu0
    %v519 = vadd.f32 %v505, %v518
    %520 = vdwg.mxu0
    %521 = vmatpush.bf16.msra.mxu0 %v414
    %522 = vmatpush.bf16.msra.mxu0 %v413
    %523 = vmatpush.bf16.msra.mxu0 %v412
    %524 = vmatpush.bf16.msra.mxu0 %v411
    %525 = vmatpush.bf16.msra.mxu0 %v410
    %526 = vmatpush.bf16.msra.mxu0 %v409
    %527 = vmatpush.bf16.msra.mxu0 %v408
    %528 = vmatpush.bf16.msra.mxu0 %v407
    %529 = vmatmul.bf16.gmra.mxu0 %v88
    %v530 = vpop.f32.mrf.mxu0
    %v531 = vadd.f32 %v517, %v530
    %v532 = vpop.f32.mrf.mxu0
    %v533 = vadd.f32 %v519, %v532
    %534 = vdwg.mxu0
    %535 = vmatpush.bf16.msra.mxu0 %v422
    %536 = vmatpush.bf16.msra.mxu0 %v421
    %537 = vmatpush.bf16.msra.mxu0 %v420
    %538 = vmatpush.bf16.msra.mxu0 %v419
    %539 = vmatpush.bf16.msra.mxu0 %v418
    %540 = vmatpush.bf16.msra.mxu0 %v417
    %541 = vmatpush.bf16.msra.mxu0 %v416
    %542 = vmatpush.bf16.msra.mxu0 %v415
    %543 = vmatmul.bf16.gmra.mxu0 %v89
    %v544 = vpop.f32.mrf.mxu0
    %v545 = vadd.f32 %v531, %v544
    %v546 = vpop.f32.mrf.mxu0
    %v547 = vadd.f32 %v533, %v546
    %548 = vdwg.mxu0
    %549 = vmatpush.bf16.msra.mxu0 %v430
    %550 = vmatpush.bf16.msra.mxu0 %v429
    %551 = vmatpush.bf16.msra.mxu0 %v428
    %552 = vmatpush.bf16.msra.mxu0 %v427
    %553 = vmatpush.bf16.msra.mxu0 %v426
    %554 = vmatpush.bf16.msra.mxu0 %v425
    %555 = vmatpush.bf16.msra.mxu0 %v424
    %556 = vmatpush.bf16.msra.mxu0 %v423
    %557 = vmatmul.bf16.gmra.mxu0 %v90
    %v558 = vpop.f32.mrf.mxu0
    %v559 = vadd.f32 %v545, %v558
    %v560 = vpop.f32.mrf.mxu0
    %v561 = vadd.f32 %v547, %v560
    %562 = vdwg.mxu0
    %563 = vmatpush.bf16.msra.mxu0 %v438
    %564 = vmatpush.bf16.msra.mxu0 %v437
    %565 = vmatpush.bf16.msra.mxu0 %v436
    %566 = vmatpush.bf16.msra.mxu0 %v435
    %567 = vmatpush.bf16.msra.mxu0 %v434
    %568 = vmatpush.bf16.msra.mxu0 %v433
    %569 = vmatpush.bf16.msra.mxu0 %v432
    %570 = vmatpush.bf16.msra.mxu0 %v431
    %571 = vmatmul.bf16.gmra.mxu0 %v91
    %v572 = vpop.f32.mrf.mxu0
    %v573 = vadd.f32 %v559, %v572
    %v574 = vpop.f32.mrf.mxu0
    %v575 = vadd.f32 %v561, %v574
    %576 = vdwg.mxu0
    %577 = vmatpush.bf16.msra.mxu0 0
    %578 = vmatpush.bf16.msra.mxu0 0
    %579 = vmatpush.bf16.msra.mxu0 0
    %580 = vmatpush.bf16.msra.mxu0 0
    %581 = vmatpush.bf16.msra.mxu0 0
    %582 = vmatpush.bf16.msra.mxu0 0
    %583 = vmatpush.bf16.msra.mxu0 0
    %584 = vmatpush.bf16.msra.mxu0 %v439
    %585 = vmatmul.bf16.gmra.mxu0 %v491
    %v586 = vpop.f32.mrf.mxu0
    %v587 = vadd.f32 %v573, %v586
    %v588 = vpop.f32.mrf.mxu0
    %v589 = vadd.f32 %v575, %v588
    %590 = vdwg.mxu0
    %v591 = vmax.f32 %v587, 0.0
    %v592 = vmax.f32 %v589, 0.0
    %v593 = vpack.c.bf16 %v592, %v591
    %v594 = vld [vmem:[%s3] sm:$0xff]
    %v595 = vld [vmem:[%s3 + $0x8] sm:$0xff]
    %v596 = vld [vmem:[%s3 + $0x10] sm:$0xff]
    %v597 = vld [vmem:[%s3 + $0x18] sm:$0xff]
    %v598 = vld [vmem:[%s3 + $0x20] sm:$0xff]
    %v599 = vld [vmem:[%s3 + $0x28] sm:$0xff]
    %v600 = vld [vmem:[%s3 + $0x30] sm:$0xff]
    %v601 = vld [vmem:[%s3 + $0x38] sm:$0xff]
    %v602 = vld [vmem:[%s3 + $0x40] sm:$0xff]
    %v603 = vld [vmem:[%s3 + $0x48] sm:$0xff]
    %v604 = vld [vmem:[%s3 + $0x50] sm:$0xff]
    %v605 = vld [vmem:[%s3 + $0x58] sm:$0xff]
    %v606 = vld [vmem:[%s3 + $0x60] sm:$0xff]
    %v607 = vld [vmem:[%s3 + $0x68] sm:$0xff]
    %v608 = vld [vmem:[%s3 + $0x70] sm:$0xff]
    %v609 = vld [vmem:[%s3 + $0x78] sm:$0xff]
    %v610 = vld [vmem:[%s4] sm:$0x3]
    %v612 = vperm.slane %v610, 0
    %v613 = vperm.slane %v610, 1
    %v632 = vunpack.c.l.b16 %v594
    %v633 = vunpack.c.h.b16 %v594
    %v634 = vunpack.c.l.b16 %v595
    %v635 = vunpack.c.h.b16 %v595
    %v636 = vunpack.c.l.b16 %v596
    %v637 = vunpack.c.h.b16 %v596
    %v638 = vunpack.c.l.b16 %v597
    %v639 = vunpack.c.h.b16 %v597
    %v640 = vunpack.c.l.b16 %v598
    %v641 = vunpack.c.h.b16 %v598
    %v642 = vunpack.c.l.b16 %v599
    %v643 = vunpack.c.h.b16 %v599
    %v644 = vunpack.c.l.b16 %v600
    %v645 = vunpack.c.h.b16 %v600
    %v646 = vunpack.c.l.b16 %v601
    %v647 = vunpack.c.h.b16 %v601
    %v648 = vunpack.c.l.b16 %v602
    %v649 = vunpack.c.h.b16 %v602
    %v650 = vunpack.c.l.b16 %v603
    %v651 = vunpack.c.h.b16 %v603
    %v652 = vunpack.c.l.b16 %v604
    %v653 = vunpack.c.h.b16 %v604
    %v654 = vunpack.c.l.b16 %v605
    %v655 = vunpack.c.h.b16 %v605
    %v656 = vunpack.c.l.b16 %v606
    %v657 = vunpack.c.h.b16 %v606
    %v658 = vunpack.c.l.b16 %v607
    %v659 = vunpack.c.h.b16 %v607
    %v660 = vunpack.c.l.b16 %v608
    %v661 = vunpack.c.h.b16 %v608
    %v662 = vunpack.c.l.b16 %v609
    %v663 = vunpack.c.h.b16 %v609
    %v664 = vpack.c.b16 %v634, %v632
    %v665 = vpack.c.b16 %v635, %v633
    %v666 = vpack.c.b16 %v638, %v636
    %v667 = vpack.c.b16 %v639, %v637
    %v668 = vpack.c.b16 %v642, %v640
    %v669 = vpack.c.b16 %v643, %v641
    %v670 = vpack.c.b16 %v646, %v644
    %v671 = vpack.c.b16 %v647, %v645
    %v672 = vpack.c.b16 %v650, %v648
    %v673 = vpack.c.b16 %v651, %v649
    %v674 = vpack.c.b16 %v654, %v652
    %v675 = vpack.c.b16 %v655, %v653
    %v676 = vpack.c.b16 %v658, %v656
    %v677 = vpack.c.b16 %v659, %v657
    %v678 = vpack.c.b16 %v662, %v660
    %v679 = vpack.c.b16 %v663, %v661
    %696 = vmatpush.bf16.msra.mxu0 %v678
    %697 = vmatpush.bf16.msra.mxu0 %v676
    %698 = vmatpush.bf16.msra.mxu0 %v674
    %699 = vmatpush.bf16.msra.mxu0 %v672
    %700 = vmatpush.bf16.msra.mxu0 %v670
    %701 = vmatpush.bf16.msra.mxu0 %v668
    %702 = vmatpush.bf16.msra.mxu0 %v666
    %703 = vmatpush.bf16.msra.mxu0 %v664
    %704 = vmatmul.bf16.gmra.mxu0 %v593
    %v705 = vpop.f32.mrf.mxu0
    %v706 = vadd.f32 %v612, %v705
    %v707 = vpop.f32.mrf.mxu0
    %v708 = vadd.f32 %v612, %v707
    %709 = vdwg.mxu0
    %710 = vmatpush.bf16.msra.mxu0 %v679
    %711 = vmatpush.bf16.msra.mxu0 %v677
    %712 = vmatpush.bf16.msra.mxu0 %v675
    %713 = vmatpush.bf16.msra.mxu0 %v673
    %714 = vmatpush.bf16.msra.mxu0 %v671
    %715 = vmatpush.bf16.msra.mxu0 %v669
    %716 = vmatpush.bf16.msra.mxu0 %v667
    %717 = vmatpush.bf16.msra.mxu0 %v665
    %718 = vmatmul.bf16.gmra.mxu0 %v593
    %v719 = vpop.f32.mrf.mxu0
    %v720 = vadd.f32 %v613, %v719
    %v721 = vpop.f32.mrf.mxu0
    %v722 = vadd.f32 %v613, %v721
    %723 = vdwg.mxu0
    %v724 = vmax.f32 %v706, 0.0
    %v725 = vmax.f32 %v720, 0.0
    %v726 = vmax.f32 %v708, 0.0
    %v727 = vmax.f32 %v722, 0.0
    %v728 = vpack.c.bf16 %v726, %v724
    %v729 = vpack.c.bf16 %v727, %v725
    %v730 = vld [vmem:[#allocation4] sm:$0xf]
    %v731 = vld [vmem:[#allocation4 + $0x4] sm:$0xf]
    %v732 = vld [vmem:[#allocation4 + $0x8] sm:$0xf]
    %v733 = vld [vmem:[#allocation4 + $0xc] sm:$0xf]
    %v734 = vld [vmem:[#allocation4 + $0x10] sm:$0xf]
    %v735 = vld [vmem:[#allocation4 + $0x14] sm:$0xf]
    %v736 = vld [vmem:[#allocation4 + $0x18] sm:$0xf]
    %v737 = vld [vmem:[#allocation4 + $0x1c] sm:$0xf]
    %v738 = vld [vmem:[#allocation4 + $0x20] sm:$0xf]
    %v739 = vld [vmem:[#allocation4 + $0x24] sm:$0xf]
    %v740 = vld [vmem:[#allocation4 + $0x28] sm:$0xf]
    %v741 = vld [vmem:[#allocation4 + $0x2c] sm:$0xf]
    %v742 = vld [vmem:[#allocation4 + $0x30] sm:$0xf]
    %v743 = vld [vmem:[#allocation4 + $0x34] sm:$0xf]
    %v744 = vld [vmem:[#allocation4 + $0x38] sm:$0xf]
    %v745 = vld [vmem:[#allocation4 + $0x3c] sm:$0xf]
    %v746 = vld [vmem:[#allocation4 + $0x40] sm:$0xf]
    %v747 = vld [vmem:[#allocation4 + $0x44] sm:$0xf]
    %v748 = vld [vmem:[#allocation4 + $0x48] sm:$0xf]
    %v749 = vld [vmem:[#allocation4 + $0x4c] sm:$0xf]
    %v750 = vld [vmem:[#allocation4 + $0x50] sm:$0xf]
    %v751 = vld [vmem:[#allocation4 + $0x54] sm:$0xf]
    %v752 = vld [vmem:[#allocation4 + $0x58] sm:$0xf]
    %v753 = vld [vmem:[#allocation4 + $0x5c] sm:$0xf]
    %v754 = vld [vmem:[#allocation4 + $0x60] sm:$0xf]
    %v755 = vld [vmem:[#allocation4 + $0x64] sm:$0xf]
    %v756 = vld [vmem:[#allocation4 + $0x68] sm:$0xf]
    %v757 = vld [vmem:[#allocation4 + $0x6c] sm:$0xf]
    %v758 = vld [vmem:[#allocation4 + $0x70] sm:$0xf]
    %v759 = vld [vmem:[#allocation4 + $0x74] sm:$0xf]
    %v760 = vld [vmem:[#allocation4 + $0x78] sm:$0xf]
    %v761 = vld [vmem:[#allocation4 + $0x7c] sm:$0xf]
    %v762 = vld [vmem:[#allocation6] sm:$0x1]
    %v764 = vperm.slane %v762, 0
    %v798 = vunpack.c.l.b16 %v730
    %v799 = vunpack.c.l.b16 %v731
    %v800 = vunpack.c.l.b16 %v732
    %v801 = vunpack.c.l.b16 %v733
    %v802 = vunpack.c.l.b16 %v734
    %v803 = vunpack.c.l.b16 %v735
    %v804 = vunpack.c.l.b16 %v736
    %v805 = vunpack.c.l.b16 %v737
    %v806 = vunpack.c.l.b16 %v738
    %v807 = vunpack.c.l.b16 %v739
    %v808 = vunpack.c.l.b16 %v740
    %v809 = vunpack.c.l.b16 %v741
    %v810 = vunpack.c.l.b16 %v742
    %v811 = vunpack.c.l.b16 %v743
    %v812 = vunpack.c.l.b16 %v744
    %v813 = vunpack.c.l.b16 %v745
    %v814 = vunpack.c.l.b16 %v746
    %v815 = vunpack.c.l.b16 %v747
    %v816 = vunpack.c.l.b16 %v748
    %v817 = vunpack.c.l.b16 %v749
    %v818 = vunpack.c.l.b16 %v750
    %v819 = vunpack.c.l.b16 %v751
    %v820 = vunpack.c.l.b16 %v752
    %v821 = vunpack.c.l.b16 %v753
    %v822 = vunpack.c.l.b16 %v754
    %v823 = vunpack.c.l.b16 %v755
    %v824 = vunpack.c.l.b16 %v756
    %v825 = vunpack.c.l.b16 %v757
    %v826 = vunpack.c.l.b16 %v758
    %v827 = vunpack.c.l.b16 %v759
    %v828 = vunpack.c.l.b16 %v760
    %v829 = vunpack.c.l.b16 %v761
    %v830 = vpack.c.b16 %v799, %v798
    %v831 = vpack.c.b16 %v801, %v800
    %v832 = vpack.c.b16 %v803, %v802
    %v833 = vpack.c.b16 %v805, %v804
    %v834 = vpack.c.b16 %v807, %v806
    %v835 = vpack.c.b16 %v809, %v808
    %v836 = vpack.c.b16 %v811, %v810
    %v837 = vpack.c.b16 %v813, %v812
    %v838 = vpack.c.b16 %v815, %v814
    %v839 = vpack.c.b16 %v817, %v816
    %v840 = vpack.c.b16 %v819, %v818
    %v841 = vpack.c.b16 %v821, %v820
    %v842 = vpack.c.b16 %v823, %v822
    %v843 = vpack.c.b16 %v825, %v824
    %v844 = vpack.c.b16 %v827, %v826
    %v845 = vpack.c.b16 %v829, %v828
    %862 = vmatpush.bf16.msra.mxu0 %v837
    %863 = vmatpush.bf16.msra.mxu0 %v836
    %864 = vmatpush.bf16.msra.mxu0 %v835
    %865 = vmatpush.bf16.msra.mxu0 %v834
    %866 = vmatpush.bf16.msra.mxu0 %v833
    %867 = vmatpush.bf16.msra.mxu0 %v832
    %868 = vmatpush.bf16.msra.mxu0 %v831
    %869 = vmatpush.bf16.msra.mxu0 %v830
    %870 = vmatmul.bf16.gmra.mxu0 %v728
    %v871 = vpop.f32.mrf.mxu0
    %v872 = vadd.f32 %v764, %v871
    %v873 = vpop.f32.mrf.mxu0
    %v874 = vadd.f32 %v764, %v873
    %875 = vdwg.mxu0
    %876 = vmatpush.bf16.msra.mxu0 %v845
    %877 = vmatpush.bf16.msra.mxu0 %v844
    %878 = vmatpush.bf16.msra.mxu0 %v843
    %879 = vmatpush.bf16.msra.mxu0 %v842
    %880 = vmatpush.bf16.msra.mxu0 %v841
    %881 = vmatpush.bf16.msra.mxu0 %v840
    %882 = vmatpush.bf16.msra.mxu0 %v839
    %883 = vmatpush.bf16.msra.mxu0 %v838
    %884 = vmatmul.bf16.gmra.mxu0 %v729
    %v885 = vpop.f32.mrf.mxu0
    %v886 = vadd.f32 %v872, %v885
    %v887 = vpop.f32.mrf.mxu0
    %v888 = vadd.f32 %v874, %v887
    %889 = vdwg.mxu0
    %v890 = vlaneseq
    %v891 = vand.u32 %v890, 127
    %vm892 = vcmp.lt.s32.totalorder %v891, 10
    %v893 = vsel %vm892, %v886, -1e+30
    %v894 = vsel %vm892, %v888, -1e+30
    %895 = vmax.xlane.f32.xlu0 %v893
    %v896 = vpop.xlane.xlu0 %895
    %897 = vmax.xlane.f32.xlu0 %v894
    %v898 = vpop.xlane.xlu0 %897
    %v899 = vsub.f32 %v893, %v896
    %v900 = vsub.f32 %v894, %v898
    %v901 = vmul.f32 %v899, 1.442695
    %v902 = vpow.pop %v901
    %v903 = vmul.f32 %v900, 1.442695
    %v904 = vpow.pop %v903
    %905 = vadd.xlane.f32.xlu0 %v902
    %v906 = vpop.xlane.xlu0 %905
    %907 = vadd.xlane.f32.xlu0 %v904
    %v908 = vpop.xlane.xlu0 %907
    %v909 = vrcp.pop %v906
    %v910 = vrcp.pop %v908
    %v911 = vmul.f32 %v902, %v909
    %v912 = vmul.f32 %v904, %v910
    %v913 = vpack.c.bf16 %v911, %v911
    %v914 = vpack.c.bf16 %v912, %v912
    %915 = vst [vmem:[%s7] sm:$0xf] %v913
    %916 = vst [vmem:[%s7 + $0x4] sm:$0xf] %v914
    // Predicated region
    $region42: #{mnist_forward.1} parent=1 // pred_check
      _
    $region43: #{mnist_forward.1} parent=1 // pred_check_branch
      %918 = sbr.rel (0) target = $region45
    $region44: #{mnist_forward.1} parent=1 // pred_region
      _
    $region45: #{mnist_forward.1} parent=1 // pred_fallthru
      _
    // Predicated region
    $region46: #{mnist_forward.1} parent=1 // pred_check
      _
    $region47: #{mnist_forward.1} parent=1 // pred_check_branch
      %920 = sbr.rel (0) target = $region49
    $region48: #{mnist_forward.1} parent=1 // pred_region
      _
    $region49: #{mnist_forward.1} parent=1 // pred_fallthru
      _
    %921 = vsyncpa [#allocation3], 1
    %922 = vsyncpa [#allocation5], 1

</llo_original>
